<compile_context>
chip_gen: v7x
topology: tpu7x:2x2x1
jax: 0.10.0
libtpu: 0.0.40
codegen_flags: <defaults>
</compile_context>

<pallas_src>
import numpy as np
import jax
import jax.numpy as jnp
from jax.experimental import pallas as pl
from jax.experimental.pallas import tpu as pltpu


# ---------------------------------------------------------------------------
# Generation-aware VMEM budget (v5e/v6e: 128 MiB, v7x: 64 MiB per TC).
# ---------------------------------------------------------------------------
def _vmem_budget_bytes():
    cap = 64 * 1024 * 1024
    try:
        info = pltpu.get_tpu_info()
        c = getattr(info, "vmem_capacity_bytes", None)
        if c:
            cap = int(c)
    except Exception:
        pass
    return int(cap * 3 // 4)          # leave headroom for compiler scratch


# ---------------------------------------------------------------------------
# Shared row-tiled GEMM runner: LHS row-tiled, small RHS resident, lane-dense
# output stores, all grid axes "parallel".
# ---------------------------------------------------------------------------
def _pick_row_tile(total_rows, out_lanes, out_itemsize,
                   target_bytes=2 << 20, max_tm=2048, granule=16):
    tm = target_bytes // max(1, out_lanes * out_itemsize)
    tm = int(min(max_tm, max(granule, tm)))
    tm = (tm // granule) * granule
    rows_g = ((total_rows + granule - 1) // granule) * granule
    tm = min(tm, rows_g)
    # Keep >= 2 grid steps whenever possible so both v7x TensorCores get work.
    if rows_g >= 2 * granule and rows_g // tm < 2:
        tm = max(granule, ((rows_g // 2) // granule) * granule)
    return max(granule, tm)


def _row_tiled_gemm(kernel, lhs, rhs, out_lanes, out_dtype,
                    target_tile_bytes=2 << 20):
    rows, k = lhs.shape
    out_itemsize = np.dtype(out_dtype).itemsize
    tm = _pick_row_tile(rows, out_lanes, out_itemsize, target_tile_bytes)
    rows_pad = pl.cdiv(rows, tm) * tm
    if rows_pad != rows:
        lhs = jnp.concatenate(
            [lhs, jnp.zeros((rows_pad - rows, k), lhs.dtype)], axis=0)

    # double-buffered in/out tiles + resident RHS
    est = (2 * tm * k * np.dtype(lhs.dtype).itemsize
           + 2 * tm * out_lanes * out_itemsize
           + 2 * int(np.prod(rhs.shape)) * np.dtype(rhs.dtype).itemsize)
    cp_kwargs = dict(dimension_semantics=("parallel",))
    if est > 10 * 1024 * 1024:
        cp_kwargs["vmem_limit_bytes"] = int(
            min(max(2 * est, 32 * 1024 * 1024), _vmem_budget_bytes()))

    out = pl.pallas_call(
        kernel,
        out_shape=jax.ShapeDtypeStruct((rows_pad, out_lanes), out_dtype),
        grid=(rows_pad // tm,),
        in_specs=[
            pl.BlockSpec((tm, k), lambda i: (i, 0)),
            pl.BlockSpec(rhs.shape, lambda i: (0, 0)),   # resident RHS
        ],
        out_specs=pl.BlockSpec((tm, out_lanes), lambda i: (i, 0)),
        compiler_params=pltpu.CompilerParams(**cp_kwargs),
    )(lhs, rhs)
    return out[:rows] if rows_pad != rows else out


# ---------------------------------------------------------------------------
# Kernel 1: fused width+height relative-key GEMM.
#   q:   (tm, D) f32  -> cast to bf16 in VMEM (full-rate MXU)
#   rk:  (R_pad, D) bf16, zero-padded so R_pad % 128 == 0 (lane-dense stores)
#   out: (tm, R_pad) bf16 (f32 MXU accumulation, bf16 writeback)
# ---------------------------------------------------------------------------
def _qk_gemm_kernel(q_ref, rk_ref, o_ref):
    qb = q_ref[...].astype(jnp.bfloat16)
    o_ref[...] = jax.lax.dot_general(                 # contract last dims: no .T
        qb, rk_ref[...], (((1,), (1,)), ((), ())),
        preferred_element_type=jnp.float32).astype(o_ref.dtype)


# ---------------------------------------------------------------------------
# Kernel 2: fused broadcast ("repeat") + rearrange + add, as ONE matmul.
#   x:   (tm, G*2f) bf16   rows of [lw(kc=0..f-1) | lh(kr=0..f-1)] for G queries
#   e:   (G*2f, G*f^2) bf16 block-diagonal 0/1 selection matrix
#   out: (tm, G*f^2) f32,  out = x @ e  (MXU, f32 accumulate)
# ---------------------------------------------------------------------------
def _expand_add_kernel(x_ref, e_ref, o_ref):
    o_ref[...] = jax.lax.dot_general(
        x_ref[...], e_ref[...], (((1,), (0,)), ((), ())),
        preferred_element_type=jnp.float32).astype(o_ref.dtype)


def _pick_group(ff):
    """Smallest divisor G of f^2 such that G*f^2 >= 128 (lane-dense output)."""
    if ff >= 128:
        return 1
    g = ff
    for cand in range(1, ff + 1):
        if ff % cand == 0 and cand * ff >= 128:
            g = cand
            break
    return g


def _make_selection_matrix(f, g):
    """[Ew; Eh] selection (2f, f^2), replicated block-diagonally g times (bf16)."""
    ff = f * f
    kr = np.arange(ff) // f
    kc = np.arange(ff) % f
    sel_w = (kc[None, :] == np.arange(f)[:, None]).astype(np.float32)   # (f, ff)
    sel_h = (kr[None, :] == np.arange(f)[:, None]).astype(np.float32)   # (f, ff)
    base = np.concatenate([sel_w, sel_h], axis=0)                       # (2f, ff)
    big = np.kron(np.eye(g, dtype=np.float32), base)                    # (2fg, ffg)
    return jnp.asarray(big, dtype=jnp.bfloat16)                         # exact in bf16


# ---------------------------------------------------------------------------
# JAX glue (pure data movement, mirrors the PyTorch helpers)
# ---------------------------------------------------------------------------
def rel_to_abs(x):
    # x: (b, h, l, 2l-1) -> (b, h, l, l)
    b, h, l, _ = x.shape
    x = jnp.concatenate([x, jnp.zeros((b, h, l, 1), x.dtype)], axis=3)
    flat_x = x.reshape(b, h, l * 2 * l)
    flat_x = jnp.concatenate([flat_x, jnp.zeros((b, h, l - 1), x.dtype)], axis=2)
    final = flat_x.reshape(b, h, l + 1, 2 * l - 1)
    return final[:, :, :l, l - 1:]


def rel_pos_emb_forward(q, rel_height, rel_width, fmap_size):
    b, heads, n_seq, d = q.shape
    f = fmap_size
    assert n_seq == f * f
    n = b * heads
    r = 2 * f - 1

    # ---- Kernel 1: one GEMM for both relative directions (bf16 rel table) ----
    rel_cat = jnp.concatenate([rel_width, rel_height], axis=0).astype(jnp.bfloat16)
    r_pad = ((2 * r + 127) // 128) * 128
    if r_pad > 2 * r:
        rel_cat = jnp.concatenate(
            [rel_cat, jnp.zeros((r_pad - 2 * r, d), jnp.bfloat16)], axis=0)

    logits = _row_tiled_gemm(_qk_gemm_kernel, q.reshape(n * f * f, d), rel_cat,
                             out_lanes=r_pad, out_dtype=jnp.bfloat16)
    logits = logits.reshape(b, heads, f, f, r_pad)
    lw_raw = logits[..., :r]                                       # [b,h,x,y,r]
    lh_raw = logits[..., r:2 * r]                                  # [b,h,x,y,r]

    # width: rel_to_abs along (y, r) -> [b,h,x,y,kc]
    lw_small = rel_to_abs(lw_raw.reshape(b, heads * f, f, r)
                          ).reshape(b, heads, f, f, f)
    # height: rel_to_abs along (x, r): swap x,y (small n*f^3 transpose), then back
    lh_small = rel_to_abs(lh_raw.transpose(0, 1, 3, 2, 4).reshape(b, heads * f, f, r)
                          ).reshape(b, heads, f, f, f)             # [b,h,y,x,kr]
    lh_small = lh_small.transpose(0, 1, 3, 2, 4)                   # [b,h,x,y,kr]

    # ---- Kernel 2: fused expand+add, out[q, kr*f+kc] = lw[q,kc] + lh[q,kr] ----
    ff = f * f
    lwlh = jnp.concatenate([lw_small, lh_small], axis=-1)          # (b,h,f,f,2f) bf16
    g = _pick_group(ff)
    rows_per_n = ff // g
    kdim = g * 2 * f
    lanes = g * ff
    lhs = lwlh.reshape(n * rows_per_n, kdim).astype(jnp.bfloat16)  # contiguous regroup
    e_big = _make_selection_matrix(f, g)                           # (kdim, lanes) bf16

    out = _row_tiled_gemm(_expand_add_kernel, lhs, e_big,
                          out_lanes=lanes, out_dtype=jnp.float32)
    # (n*ff/g, g*ff) flattens row-major to exactly (n, ff, ff): contiguous reshape.
    return out.reshape(b, heads, ff, ff)


# ---------------------------------------------------------------------------
# Pure-JAX f32 reference (mirrors the PyTorch module exactly)
# ---------------------------------------------------------------------------
def _reference_forward(q, rel_height, rel_width, f):
    b, heads, _, d = q.shape
    q5 = q.reshape(b, heads, f, f, d)

    def rel_logits_1d(qq, rel_k):
        bb, hh, H, W, _ = qq.shape
        logits = jnp.einsum('bhxyd,rd->bhxyr', qq, rel_k)
        logits = rel_to_abs(logits.reshape(bb, hh * H, W, 2 * W - 1))
        logits = logits.reshape(bb, hh, H, W, W)
        return jnp.broadcast_to(logits[:, :, :, None, :, :],
                                (bb, hh, H, H, W, W))

    lw = rel_logits_1d(q5, rel_width)
    lw = lw.transpose(0, 1, 2, 4, 3, 5).reshape(b, heads, f * f, f * f)
    qT = q5.transpose(0, 1, 3, 2, 4)
    lh = rel_logits_1d(qT, rel_height)
    lh = lh.transpose(0, 1, 4, 2, 5, 3).reshape(b, heads, f * f, f * f)
    return lw + lh


# ---------------------------------------------------------------------------
if __name__ == "__main__":
    batch, heads, fmap_size, dim_head = 2, 4, 8, 16
    seq = fmap_size * fmap_size
    scale = dim_head ** (-0.5)

    key = jax.random.PRNGKey(0)
    k_q, k_h, k_w = jax.random.split(key, 3)
    q = jax.random.normal(k_q, (batch, heads, seq, dim_head), dtype=jnp.float32)
    rel_height = jax.random.normal(
        k_h, (fmap_size * 2 - 1, dim_head), dtype=jnp.float32) * scale
    rel_width = jax.random.normal(
        k_w, (fmap_size * 2 - 1, dim_head), dtype=jnp.float32) * scale

    fwd = jax.jit(lambda q_, rh_, rw_: rel_pos_emb_forward(q_, rh_, rw_, fmap_size))
    out = jax.block_until_ready(fwd(q, rel_height, rel_width))

    ref = jax.block_until_ready(
        _reference_forward(q, rel_height, rel_width, fmap_size))

    assert out.shape == (batch, heads, seq, seq), out.shape
    # bf16 MXU inputs + bf16 intermediate logits (f32 accumulation) -> bf16-class tol
    np.testing.assert_allclose(np.asarray(out), np.asarray(ref),
                               rtol=2e-2, atol=5e-2)
    print("KERNEL_OK")
</pallas_src>

<mosaic_0001>
module attributes {stable_mosaic.version = 11 : i64} {
  func.func @_qk_gemm_kernel(%arg0: i32, %arg1: memref<256x16xf32, #tpu.memory_space<vmem>>, %arg2: memref<128x16xbf16, #tpu.memory_space<vmem>>, %arg3: memref<256x128xbf16, #tpu.memory_space<vmem>>) attributes {dimension_semantics = [#tpu.dimension_semantics<parallel>], iteration_bounds = array<i64: 2>, scalar_prefetch = 0 : i64, scratch_operands = 0 : i64, tpu.core_type = #tpu.core_type<tc>, window_params = [{transform_indices = @transform_0, window_bounds = array<i64: 256, 16>}, {pipeline_mode = #tpu.pipeline_mode<synchronous>, transform_indices = @transform_1, window_bounds = array<i64: 128, 16>}, {transform_indices = @transform_2, window_bounds = array<i64: 256, 128>}]} {
    %c0 = arith.constant 0 : index
    %c0_0 = arith.constant 0 : index
    %0 = vector.load %arg1[%c0, %c0_0] : memref<256x16xf32, #tpu.memory_space<vmem>>, vector<256x16xf32>
    %1 = arith.truncf %0 : vector<256x16xf32> to vector<256x16xbf16>
    %c0_1 = arith.constant 0 : index
    %c0_2 = arith.constant 0 : index
    %2 = vector.load %arg2[%c0_1, %c0_2] : memref<128x16xbf16, #tpu.memory_space<vmem>>, vector<128x16xbf16>
    %cst = arith.constant dense<0.000000e+00> : vector<256x128xf32>
    %3 = tpu.matmul %1, %2, %cst {dimension_numbers = #tpu.dot_dimension_numbers<[1], [1], [0], [0], [0, 0, 1, 0], [], []>} : vector<256x16xbf16>, vector<128x16xbf16>, vector<256x128xf32> -> vector<256x128xf32>
    %4 = arith.truncf %3 : vector<256x128xf32> to vector<256x128xbf16>
    %c0_3 = arith.constant 0 : index
    %c0_4 = arith.constant 0 : index
    %5 = vector.load %arg3[%c0_3, %c0_4] : memref<256x128xbf16, #tpu.memory_space<vmem>>, vector<256x128xbf16>
    tpu.vector_store %arg3[%c0_3, %c0_4], %4 {strides = array<i32>} : memref<256x128xbf16, #tpu.memory_space<vmem>>, vector<256x128xbf16>,
    return
  }
  func.func @transform_0(%arg0: i32) -> (i32, i32) {
    %c0_i32 = arith.constant 0 : i32
    %c0_i32_0 = arith.constant 0 : i32
    return %arg0, %c0_i32 : i32, i32
  }
  func.func @transform_1(%arg0: i32) -> (i32, i32) {
    %c0_i32 = arith.constant 0 : i32
    %c0_i32_0 = arith.constant 0 : i32
    %c0_i32_1 = arith.constant 0 : i32
    return %c0_i32, %c0_i32_0 : i32, i32
  }
  func.func @transform_2(%arg0: i32) -> (i32, i32) {
    %c0_i32 = arith.constant 0 : i32
    %c0_i32_0 = arith.constant 0 : i32
    return %arg0, %c0_i32 : i32, i32
  }
}

module attributes {stable_mosaic.version = 11 : i64} {
  func.func @_expand_add_kernel(%arg0: i32, %arg1: memref<128x32xbf16, #tpu.memory_space<vmem>>, %arg2: memref<32x128xbf16, #tpu.memory_space<vmem>>, %arg3: memref<128x128xf32, #tpu.memory_space<vmem>>) attributes {dimension_semantics = [#tpu.dimension_semantics<parallel>], iteration_bounds = array<i64: 2>, scalar_prefetch = 0 : i64, scratch_operands = 0 : i64, tpu.core_type = #tpu.core_type<tc>, window_params = [{transform_indices = @transform_0, window_bounds = array<i64: 128, 32>}, {pipeline_mode = #tpu.pipeline_mode<synchronous>, transform_indices = @transform_1, window_bounds = array<i64: 32, 128>}, {transform_indices = @transform_2, window_bounds = array<i64: 128, 128>}]} {
    %c0 = arith.constant 0 : index
    %c0_0 = arith.constant 0 : index
    %0 = vector.load %arg1[%c0, %c0_0] : memref<128x32xbf16, #tpu.memory_space<vmem>>, vector<128x32xbf16>
    %c0_1 = arith.constant 0 : index
    %c0_2 = arith.constant 0 : index
    %1 = vector.load %arg2[%c0_1, %c0_2] : memref<32x128xbf16, #tpu.memory_space<vmem>>, vector<32x128xbf16>
    %cst = arith.constant dense<0.000000e+00> : vector<128x128xf32>
    %2 = tpu.matmul %0, %1, %cst {dimension_numbers = #tpu.dot_dimension_numbers<[1], [0], [0], [1], [0, 0, 1, 1], [], []>} : vector<128x32xbf16>, vector<32x128xbf16>, vector<128x128xf32> -> vector<128x128xf32>
    %c0_3 = arith.constant 0 : index
    %c0_4 = arith.constant 0 : index
    %3 = vector.load %arg3[%c0_3, %c0_4] : memref<128x128xf32, #tpu.memory_space<vmem>>, vector<128x128xf32>
    tpu.vector_store %arg3[%c0_3, %c0_4], %2 {strides = array<i32>} : memref<128x128xf32, #tpu.memory_space<vmem>>, vector<128x128xf32>,
    return
  }
  func.func @transform_0(%arg0: i32) -> (i32, i32) {
    %c0_i32 = arith.constant 0 : i32
    %c0_i32_0 = arith.constant 0 : i32
    return %arg0, %c0_i32 : i32, i32
  }
  func.func @transform_1(%arg0: i32) -> (i32, i32) {
    %c0_i32 = arith.constant 0 : i32
    %c0_i32_0 = arith.constant 0 : i32
    %c0_i32_1 = arith.constant 0 : i32
    return %c0_i32, %c0_i32_0 : i32, i32
  }
  func.func @transform_2(%arg0: i32) -> (i32, i32) {
    %c0_i32 = arith.constant 0 : i32
    %c0_i32_0 = arith.constant 0 : i32
    return %arg0, %c0_i32 : i32, i32
  }
}

</mosaic_0001>

<llo_original>
// kernel: _lambda_.2
$region0: #{_lambda_.2}
  #allocation0 [shape = 'u32[]', space=smem, size = 0x4, offset = 0x4, fixed_abs, tag = 'smem constant byte address 0x4 - core index']
  #allocation1 [shape = 'u32[144,128]{1,0:T(1,128)}', space=vmem, size = 0x12000, scoped, tag = 'internal scratch']
  %s0 = inlined_call_operand.vmem [shape: f32[512,16], index: 0, kind: input, shape index: {}]
  %s1 = inlined_call_operand.vmem [shape: bf16[128,16], index: 1, kind: input, shape index: {}]
  %s2 = inlined_call_operand.vmem [shape: bf16[512,128], index: 2, kind: output, shape index: {}]
  %s3 = sld [smem:[#allocation0]]
  $region41: #{_lambda_.2} parent=0
    _
  %s5 = ssub.s32 1, %s3
  %s6 = scalar_select 0, %s5, %s3
  loop: start=0, step=1, limit=4
  $region2: #{_lambda_.2} parent=0 // loop_pre_header
    _
  $region3: #{_lambda_.2} parent=0 // loop_header
    %s8 = sphi 0, %s12
    %p9 = scmp.ge.s32.totalorder %s8, 4
    %s18 = sphi 0, %s20
    %s21 = sphi 0, %s18
    %s22 = sphi 0, %s21
    %s38 = sphi 0, %s22
    %s42 = sphi 0, %s42
    %s44 = sphi 0, %s42
    %s45 = sphi 0, %s44
    %s59 = sphi 0, %s45
    %s65 = sphi 0, %s67
    %s68 = sphi 0, %s65
    %s69 = sphi 0, %s68
    %s85 = sphi 0, %s69
  $region4: #{_lambda_.2} parent=0 // loop_header_branch
    %11 = sbr.rel (%p9) target = $region8
  $region5: #{_lambda_.2} parent=0 // loop_body
    %s13 = ssub.s32 %s8, 1
    %s14 = ssub.s32 %s8, 2
    %s15 = sadd.s32 %s8, 1
    %s16 = ssub.s32 %s8, %s15
    %p17 = scmp.eq.s32.totalorder %s16, 0
    %s19 = sadd.s32 %s18, 1
    %s20 = scalar_select %p17, %s18, %s19
    %p23 = pneg %p17
    %p24 = scmp.eq.s32.totalorder %s8, 1
    %p25 = por %p23, %p24
    %p26 = scmp.ne.s32.totalorder %s18, %s21
    %p27 = scmp.eq.s32.totalorder %s8, 0
    %p28 = por %p26, %p27
    %p29 = scmp.ne.s32.totalorder %s18, %s21
    %p30 = scmp.eq.s32.totalorder %s13, 1
    %p31 = por %p29, %p30
    %p32 = scmp.ne.s32.totalorder %s21, %s22
    %p33 = scmp.eq.s32.totalorder %s13, 0
    %p34 = por %p32, %p33
    %p35 = scmp.ne.s32.totalorder %s21, %s22
    %p36 = scmp.eq.s32.totalorder %s14, 1
    %p37 = por %p35, %p36
    %p39 = scmp.ne.s32.totalorder %s22, %s38
    %p40 = scmp.eq.s32.totalorder %s14, 0
    %p41 = por %p39, %p40
    %s43 = sadd.s32 %s42, 1
    %p46 = scmp.eq.s32.totalorder %s8, 1
    %p47 = scmp.ne.s32.totalorder %s42, %s44
    %p48 = scmp.eq.s32.totalorder %s8, 0
    %p49 = por %p47, %p48
    %p50 = scmp.ne.s32.totalorder %s42, %s44
    %p51 = scmp.eq.s32.totalorder %s13, 1
    %p52 = por %p50, %p51
    %p53 = scmp.ne.s32.totalorder %s44, %s45
    %p54 = scmp.eq.s32.totalorder %s13, 0
    %p55 = por %p53, %p54
    %p56 = scmp.ne.s32.totalorder %s44, %s45
    %p57 = scmp.eq.s32.totalorder %s14, 1
    %p58 = por %p56, %p57
    %p60 = scmp.ne.s32.totalorder %s45, %s59
    %p61 = scmp.eq.s32.totalorder %s14, 0
    %p62 = por %p60, %p61
    %s63 = ssub.s32 %s8, %s15
    %p64 = scmp.eq.s32.totalorder %s63, 0
    %s66 = sadd.s32 %s65, 1
    %s67 = scalar_select %p64, %s65, %s66
    %p70 = pneg %p64
    %p71 = scmp.eq.s32.totalorder %s8, 1
    %p72 = por %p70, %p71
    %p73 = scmp.ne.s32.totalorder %s65, %s68
    %p74 = scmp.eq.s32.totalorder %s8, 0
    %p75 = por %p73, %p74
    %p76 = scmp.ne.s32.totalorder %s65, %s68
    %p77 = scmp.eq.s32.totalorder %s13, 1
    %p78 = por %p76, %p77
    %p79 = scmp.ne.s32.totalorder %s68, %s69
    %p80 = scmp.eq.s32.totalorder %s13, 0
    %p81 = por %p79, %p80
    %p82 = scmp.ne.s32.totalorder %s68, %s69
    %p83 = scmp.eq.s32.totalorder %s14, 1
    %p84 = por %p82, %p83
    %p86 = scmp.ne.s32.totalorder %s69, %s85
    %p87 = scmp.eq.s32.totalorder %s14, 0
    %p88 = por %p86, %p87
    %p89 = scmp.le.s32.totalorder 1, %s8
    %p90 = scmp.lt.s32.totalorder %s8, 3
    %p91 = pnand %p89, %p90
    %p92 = pneg %p91
    // Predicated region
    $region9: #{_lambda_.2} parent=5 // pred_check
      _
    $region10: #{_lambda_.2} parent=5 // pred_check_branch
      %94 = sbr.rel (%p91) target = $region12
    $region11: #{_lambda_.2} parent=5 // pred_region
      %s95 = ssub.s32 %s8, 1
      // Predicated region
      $region13: #{_lambda_.2} parent=11 // pred_check
        %p96 = pneg %p55
      $region14: #{_lambda_.2} parent=11 // pred_check_branch
        %98 = sbr.rel (%p96) target = $region16
      $region15: #{_lambda_.2} parent=11 // pred_region
        _
      $region16: #{_lambda_.2} parent=11 // pred_fallthru
        _
    $region12: #{_lambda_.2} parent=5 // pred_fallthru
      _
    %p99 = scmp.lt.s32.totalorder %s8, 2
    // Predicated region
    $region17: #{_lambda_.2} parent=5 // pred_check
      %p100 = pneg %p99
    $region18: #{_lambda_.2} parent=5 // pred_check_branch
      %102 = sbr.rel (%p100) target = $region20
    $region19: #{_lambda_.2} parent=5 // pred_region
      // Predicated region
      $region21: #{_lambda_.2} parent=19 // pred_check
        %p103 = pneg %p28
      $region22: #{_lambda_.2} parent=19 // pred_check_branch
        %105 = sbr.rel (%p103) target = $region24
      $region23: #{_lambda_.2} parent=19 // pred_region
        %s106 = smul.u32 32, %s8
        %p107 = scmp.lt.s32.totalorder %s106, 63
        %s108 = scalar_select %p107, %s106, 63
        %s109 = smul.addr %s108, 8
        %s110 = scalar_lea.vmem %s0, %s109
        %s111 = smul.u32 32, %s8
      $region24: #{_lambda_.2} parent=19 // pred_fallthru
        _
    $region20: #{_lambda_.2} parent=5 // pred_fallthru
      _
    %p112 = scmp.le.s32.totalorder 1, %s8
    %p113 = scmp.lt.s32.totalorder %s8, 3
    %p114 = pnand %p112, %p113
    %p115 = pneg %p114
    // Predicated region
    $region25: #{_lambda_.2} parent=5 // pred_check
      _
    $region26: #{_lambda_.2} parent=5 // pred_check_branch
      %117 = sbr.rel (%p114) target = $region28
    $region27: #{_lambda_.2} parent=5 // pred_region
      %s118 = ssub.s32 %s8, 1
      %s119 = smul.u32 32, %s13
      %p120 = scmp.lt.s32.totalorder %s119, 63
      %s121 = scalar_select %p120, %s119, 63
      %s122 = smul.addr %s121, 8
      %s123 = scalar_lea.vmem %s0, %s122
      %p124 = pneg %p34
      %p125 = pneg %p31
      %p126 = pneg %p55
      %p127 = pneg %p52
      %p128 = pneg %p81
      %p129 = pneg %p78
      %s130 = smul.u32 32, %s13
      %p131 = scmp.lt.s32.totalorder %s130, 63
      %s132 = scalar_select %p131, %s130, 63
      %s133 = smul.addr %s132, 4
      %s134 = scalar_lea.vmem %s2, %s133
      %s135 = smul.u32 32, %s13
      %p136 = scmp.lt.s32.totalorder %s135, 63
      %s137 = scalar_select %p136, %s135, 63
      %s138 = smul.addr %s137, 8
      %s139 = scalar_lea.vmem %s0, %s138
      %s140 = smul.u32 32, %s13
      %s141 = smul.u32 32, %s13
      %p142 = scmp.lt.s32.totalorder %s141, 63
      %s143 = scalar_select %p142, %s141, 63
      %s144 = smul.addr %s143, 4
      %s145 = scalar_lea.vmem %s2, %s144
      %s146 = smul.u32 32, %s13
      %v148 = vld [vmem:[%s139] sm:$0xff]
      %v149 = vld [vmem:[%s139 + $0x8] sm:$0xff]
      %v150 = vld [vmem:[%s139 + $0x10] sm:$0xff]
      %v151 = vld [vmem:[%s139 + $0x18] sm:$0xff]
      %v152 = vld [vmem:[%s139 + $0x20] sm:$0xff]
      %v153 = vld [vmem:[%s139 + $0x28] sm:$0xff]
      %v154 = vld [vmem:[%s139 + $0x30] sm:$0xff]
      %v155 = vld [vmem:[%s139 + $0x38] sm:$0xff]
      %v156 = vld [vmem:[%s139 + $0x40] sm:$0xff]
      %v157 = vld [vmem:[%s139 + $0x48] sm:$0xff]
      %v158 = vld [vmem:[%s139 + $0x50] sm:$0xff]
      %v159 = vld [vmem:[%s139 + $0x58] sm:$0xff]
      %v160 = vld [vmem:[%s139 + $0x60] sm:$0xff]
      %v161 = vld [vmem:[%s139 + $0x68] sm:$0xff]
      %v162 = vld [vmem:[%s139 + $0x70] sm:$0xff]
      %v163 = vld [vmem:[%s139 + $0x78] sm:$0xff]
      %v164 = vld [vmem:[%s139 + $0x80] sm:$0xff]
      %v165 = vld [vmem:[%s139 + $0x88] sm:$0xff]
      %v166 = vld [vmem:[%s139 + $0x90] sm:$0xff]
      %v167 = vld [vmem:[%s139 + $0x98] sm:$0xff]
      %v168 = vld [vmem:[%s139 + $0xa0] sm:$0xff]
      %v169 = vld [vmem:[%s139 + $0xa8] sm:$0xff]
      %v170 = vld [vmem:[%s139 + $0xb0] sm:$0xff]
      %v171 = vld [vmem:[%s139 + $0xb8] sm:$0xff]
      %v172 = vld [vmem:[%s139 + $0xc0] sm:$0xff]
      %v173 = vld [vmem:[%s139 + $0xc8] sm:$0xff]
      %v174 = vld [vmem:[%s139 + $0xd0] sm:$0xff]
      %v175 = vld [vmem:[%s139 + $0xd8] sm:$0xff]
      %v176 = vld [vmem:[%s139 + $0xe0] sm:$0xff]
      %v177 = vld [vmem:[%s139 + $0xe8] sm:$0xff]
      %v178 = vld [vmem:[%s139 + $0xf0] sm:$0xff]
      %v179 = vld [vmem:[%s139 + $0xf8] sm:$0xff]
      %v180 = vpack.c.bf16 %v149, %v148
      %v181 = vpack.c.bf16 %v151, %v150
      %v182 = vpack.c.bf16 %v153, %v152
      %v183 = vpack.c.bf16 %v155, %v154
      %v184 = vpack.c.bf16 %v157, %v156
      %v185 = vpack.c.bf16 %v159, %v158
      %v186 = vpack.c.bf16 %v161, %v160
      %v187 = vpack.c.bf16 %v163, %v162
      %v188 = vpack.c.bf16 %v165, %v164
      %v189 = vpack.c.bf16 %v167, %v166
      %v190 = vpack.c.bf16 %v169, %v168
      %v191 = vpack.c.bf16 %v171, %v170
      %v192 = vpack.c.bf16 %v173, %v172
      %v193 = vpack.c.bf16 %v175, %v174
      %v194 = vpack.c.bf16 %v177, %v176
      %v195 = vpack.c.bf16 %v179, %v178
      %v196 = vld [vmem:[%s1] sm:$0xf]
      %v197 = vld [vmem:[%s1 + $0x4] sm:$0xf]
      %v198 = vld [vmem:[%s1 + $0x8] sm:$0xf]
      %v199 = vld [vmem:[%s1 + $0xc] sm:$0xf]
      %v200 = vld [vmem:[%s1 + $0x10] sm:$0xf]
      %v201 = vld [vmem:[%s1 + $0x14] sm:$0xf]
      %v202 = vld [vmem:[%s1 + $0x18] sm:$0xf]
      %v203 = vld [vmem:[%s1 + $0x1c] sm:$0xf]
      %v204 = vld [vmem:[%s1 + $0x20] sm:$0xf]
      %v205 = vld [vmem:[%s1 + $0x24] sm:$0xf]
      %v206 = vld [vmem:[%s1 + $0x28] sm:$0xf]
      %v207 = vld [vmem:[%s1 + $0x2c] sm:$0xf]
      %v208 = vld [vmem:[%s1 + $0x30] sm:$0xf]
      %v209 = vld [vmem:[%s1 + $0x34] sm:$0xf]
      %v210 = vld [vmem:[%s1 + $0x38] sm:$0xf]
      %v211 = vld [vmem:[%s1 + $0x3c] sm:$0xf]
      %v228 = vunpack.c.l.b16 %v196
      %v229 = vunpack.c.l.b16 %v197
      %v230 = vunpack.c.l.b16 %v198
      %v231 = vunpack.c.l.b16 %v199
      %v232 = vunpack.c.l.b16 %v200
      %v233 = vunpack.c.l.b16 %v201
      %v234 = vunpack.c.l.b16 %v202
      %v235 = vunpack.c.l.b16 %v203
      %v236 = vunpack.c.l.b16 %v204
      %v237 = vunpack.c.l.b16 %v205
      %v238 = vunpack.c.l.b16 %v206
      %v239 = vunpack.c.l.b16 %v207
      %v240 = vunpack.c.l.b16 %v208
      %v241 = vunpack.c.l.b16 %v209
      %v242 = vunpack.c.l.b16 %v210
      %v243 = vunpack.c.l.b16 %v211
      %v244 = vpack.c.b16 %v229, %v228
      %v245 = vpack.c.b16 %v231, %v230
      %v246 = vpack.c.b16 %v233, %v232
      %v247 = vpack.c.b16 %v235, %v234
      %v248 = vpack.c.b16 %v237, %v236
      %v249 = vpack.c.b16 %v239, %v238
      %v250 = vpack.c.b16 %v241, %v240
      %v251 = vpack.c.b16 %v243, %v242
      %vm252 = vcmask 130048
      %v254 = vsel %vm252, %v180, 0
      %v257 = vsel %vm252, %v181, 0
      %v260 = vsel %vm252, %v182, 0
      %v263 = vsel %vm252, %v183, 0
      %v266 = vsel %vm252, %v184, 0
      %v269 = vsel %vm252, %v185, 0
      %v272 = vsel %vm252, %v186, 0
      %v275 = vsel %vm252, %v187, 0
      %v278 = vsel %vm252, %v188, 0
      %v281 = vsel %vm252, %v189, 0
      %v284 = vsel %vm252, %v190, 0
      %v287 = vsel %vm252, %v191, 0
      %v290 = vsel %vm252, %v192, 0
      %v293 = vsel %vm252, %v193, 0
      %v296 = vsel %vm252, %v194, 0
      %v299 = vsel %vm252, %v195, 0
      %v302 = vsel %vm252, %v244, 0
      %v305 = vsel %vm252, %v245, 0
      %v308 = vsel %vm252, %v246, 0
      %v311 = vsel %vm252, %v247, 0
      %v314 = vsel %vm252, %v248, 0
      %v317 = vsel %vm252, %v249, 0
      %v320 = vsel %vm252, %v250, 0
      %v323 = vsel %vm252, %v251, 0
      %325 = vmatprep.subr.bf16.mxu0 0
      %326 = vmatpush1.bf16.xpose.msra.mxu0 %v302
      %327 = vmatprep.subr.bf16.mxu0 0
      %328 = vmatpush1.bf16.xpose.msra.mxu0 %v305
      %329 = vmatprep.subr.bf16.mxu0 0
      %330 = vmatpush1.bf16.xpose.msra.mxu0 %v308
      %331 = vmatprep.subr.bf16.mxu0 0
      %332 = vmatpush1.bf16.xpose.msra.mxu0 %v311
      %333 = vmatprep.subr.bf16.mxu0 0
      %334 = vmatpush1.bf16.xpose.msra.mxu0 %v314
      %335 = vmatprep.subr.bf16.mxu0 0
      %336 = vmatpush1.bf16.xpose.msra.mxu0 %v317
      %337 = vmatprep.subr.bf16.mxu0 0
      %338 = vmatpush1.bf16.xpose.msra.mxu0 %v320
      %339 = vmatprep.subr.bf16.mxu0 0
      %340 = vmatpush1.bf16.xpose.msra.mxu0 %v323
      %341 = vmatprep.subr.bf16.mxu0 0
      %342 = vmatpush1.bf16.xpose.msra.mxu0 0
      %343 = vmatprep.subr.bf16.mxu0 0
      %344 = vmatpush1.bf16.xpose.msra.mxu0 0
      %345 = vmatprep.subr.bf16.mxu0 0
      %346 = vmatpush1.bf16.xpose.msra.mxu0 0
      %347 = vmatprep.subr.bf16.mxu0 0
      %348 = vmatpush1.bf16.xpose.msra.mxu0 0
      %349 = vmatprep.subr.bf16.mxu0 0
      %350 = vmatpush1.bf16.xpose.msra.mxu0 0
      %351 = vmatprep.subr.bf16.mxu0 0
      %352 = vmatpush1.bf16.xpose.msra.mxu0 0
      %353 = vmatprep.subr.bf16.mxu0 0
      %354 = vmatpush1.bf16.xpose.msra.mxu0 0
      %355 = vmatprep.subr.bf16.mxu0 0
      %356 = vmatpush1.bf16.xpose.msra.mxu0 0
      %357 = vmatprep.mubr.bf16.mxu0 0
      %358 = vmatmul.mubr.bf16.gmra.mrb[0].mxu0 %v254
      %v359 = vpop.f32.mrb[0].mxu0
      %v360 = vadd.f32 0.0, %v359
      %v361 = vpop.f32.mrb[0].mxu0
      %v362 = vpop.f32.mrb[0].mxu0
      %v363 = vadd.f32 0.0, %v362
      %v364 = vpop.f32.mrb[0].mxu0
      %365 = vmatprep.mubr.bf16.mxu0 0
      %366 = vmatmul.mubr.bf16.gmra.mrb[0].mxu0 %v257
      %v367 = vpop.f32.mrb[0].mxu0
      %v368 = vadd.f32 0.0, %v367
      %v369 = vpop.f32.mrb[0].mxu0
      %v370 = vpop.f32.mrb[0].mxu0
      %v371 = vadd.f32 0.0, %v370
      %v372 = vpop.f32.mrb[0].mxu0
      %373 = vmatprep.mubr.bf16.mxu0 0
      %374 = vmatmul.mubr.bf16.gmra.mrb[0].mxu0 %v260
      %v375 = vpop.f32.mrb[0].mxu0
      %v376 = vadd.f32 0.0, %v375
      %v377 = vpop.f32.mrb[0].mxu0
      %v378 = vpop.f32.mrb[0].mxu0
      %v379 = vadd.f32 0.0, %v378
      %v380 = vpop.f32.mrb[0].mxu0
      %381 = vmatprep.mubr.bf16.mxu0 0
      %382 = vmatmul.mubr.bf16.gmra.mrb[0].mxu0 %v263
      %v383 = vpop.f32.mrb[0].mxu0
      %v384 = vadd.f32 0.0, %v383
      %v385 = vpop.f32.mrb[0].mxu0
      %v386 = vpop.f32.mrb[0].mxu0
      %v387 = vadd.f32 0.0, %v386
      %v388 = vpop.f32.mrb[0].mxu0
      %389 = vmatprep.mubr.bf16.mxu0 0
      %390 = vmatmul.mubr.bf16.gmra.mrb[0].mxu0 %v266
      %v391 = vpop.f32.mrb[0].mxu0
      %v392 = vadd.f32 0.0, %v391
      %v393 = vpop.f32.mrb[0].mxu0
      %v394 = vpop.f32.mrb[0].mxu0
      %v395 = vadd.f32 0.0, %v394
      %v396 = vpop.f32.mrb[0].mxu0
      %397 = vmatprep.mubr.bf16.mxu0 0
      %398 = vmatmul.mubr.bf16.gmra.mrb[0].mxu0 %v269
      %v399 = vpop.f32.mrb[0].mxu0
      %v400 = vadd.f32 0.0, %v399
      %v401 = vpop.f32.mrb[0].mxu0
      %v402 = vpop.f32.mrb[0].mxu0
      %v403 = vadd.f32 0.0, %v402
      %v404 = vpop.f32.mrb[0].mxu0
      %405 = vmatprep.mubr.bf16.mxu0 0
      %406 = vmatmul.mubr.bf16.gmra.mrb[0].mxu0 %v272
      %v407 = vpop.f32.mrb[0].mxu0
      %v408 = vadd.f32 0.0, %v407
      %v409 = vpop.f32.mrb[0].mxu0
      %v410 = vpop.f32.mrb[0].mxu0
      %v411 = vadd.f32 0.0, %v410
      %v412 = vpop.f32.mrb[0].mxu0
      %413 = vmatprep.mubr.bf16.mxu0 0
      %414 = vmatmul.mubr.bf16.gmra.mrb[0].mxu0 %v275
      %v415 = vpop.f32.mrb[0].mxu0
      %v416 = vadd.f32 0.0, %v415
      %v417 = vpop.f32.mrb[0].mxu0
      %v418 = vpop.f32.mrb[0].mxu0
      %v419 = vadd.f32 0.0, %v418
      %v420 = vpop.f32.mrb[0].mxu0
      %421 = vmatprep.mubr.bf16.mxu0 0
      %422 = vmatmul.mubr.bf16.gmra.mrb[0].mxu0 %v278
      %v423 = vpop.f32.mrb[0].mxu0
      %v424 = vadd.f32 0.0, %v423
      %v425 = vpop.f32.mrb[0].mxu0
      %v426 = vpop.f32.mrb[0].mxu0
      %v427 = vadd.f32 0.0, %v426
      %v428 = vpop.f32.mrb[0].mxu0
      %429 = vmatprep.mubr.bf16.mxu0 0
      %430 = vmatmul.mubr.bf16.gmra.mrb[0].mxu0 %v281
      %v431 = vpop.f32.mrb[0].mxu0
      %v432 = vadd.f32 0.0, %v431
      %v433 = vpop.f32.mrb[0].mxu0
      %v434 = vpop.f32.mrb[0].mxu0
      %v435 = vadd.f32 0.0, %v434
      %v436 = vpop.f32.mrb[0].mxu0
      %437 = vmatprep.mubr.bf16.mxu0 0
      %438 = vmatmul.mubr.bf16.gmra.mrb[0].mxu0 %v284
      %v439 = vpop.f32.mrb[0].mxu0
      %v440 = vadd.f32 0.0, %v439
      %v441 = vpop.f32.mrb[0].mxu0
      %v442 = vpop.f32.mrb[0].mxu0
      %v443 = vadd.f32 0.0, %v442
      %v444 = vpop.f32.mrb[0].mxu0
      %445 = vmatprep.mubr.bf16.mxu0 0
      %446 = vmatmul.mubr.bf16.gmra.mrb[0].mxu0 %v287
      %v447 = vpop.f32.mrb[0].mxu0
      %v448 = vadd.f32 0.0, %v447
      %v449 = vpop.f32.mrb[0].mxu0
      %v450 = vpop.f32.mrb[0].mxu0
      %v451 = vadd.f32 0.0, %v450
      %v452 = vpop.f32.mrb[0].mxu0
      %453 = vmatprep.mubr.bf16.mxu0 0
      %454 = vmatmul.mubr.bf16.gmra.mrb[0].mxu0 %v290
      %v455 = vpop.f32.mrb[0].mxu0
      %v456 = vadd.f32 0.0, %v455
      %v457 = vpop.f32.mrb[0].mxu0
      %v458 = vpop.f32.mrb[0].mxu0
      %v459 = vadd.f32 0.0, %v458
      %v460 = vpop.f32.mrb[0].mxu0
      %461 = vmatprep.mubr.bf16.mxu0 0
      %462 = vmatmul.mubr.bf16.gmra.mrb[0].mxu0 %v293
      %v463 = vpop.f32.mrb[0].mxu0
      %v464 = vadd.f32 0.0, %v463
      %v465 = vpop.f32.mrb[0].mxu0
      %v466 = vpop.f32.mrb[0].mxu0
      %v467 = vadd.f32 0.0, %v466
      %v468 = vpop.f32.mrb[0].mxu0
      %469 = vmatprep.mubr.bf16.mxu0 0
      %470 = vmatmul.mubr.bf16.gmra.mrb[0].mxu0 %v296
      %v471 = vpop.f32.mrb[0].mxu0
      %v472 = vadd.f32 0.0, %v471
      %v473 = vpop.f32.mrb[0].mxu0
      %v474 = vpop.f32.mrb[0].mxu0
      %v475 = vadd.f32 0.0, %v474
      %v476 = vpop.f32.mrb[0].mxu0
      %477 = vmatprep.mubr.bf16.mxu0 0
      %478 = vmatmul.mubr.bf16.gmra.mrb[0].mxu0 %v299
      %v479 = vpop.f32.mrb[0].mxu0
      %v480 = vadd.f32 0.0, %v479
      %v481 = vpop.f32.mrb[0].mxu0
      %v482 = vpop.f32.mrb[0].mxu0
      %v483 = vadd.f32 0.0, %v482
      %v484 = vpop.f32.mrb[0].mxu0
      %485 = vdwg.mxu0
      %v486 = vpack.c.bf16 %v363, %v360
      %v487 = vpack.c.bf16 %v371, %v368
      %v488 = vpack.c.bf16 %v379, %v376
      %v489 = vpack.c.bf16 %v387, %v384
      %v490 = vpack.c.bf16 %v395, %v392
      %v491 = vpack.c.bf16 %v403, %v400
      %v492 = vpack.c.bf16 %v411, %v408
      %v493 = vpack.c.bf16 %v419, %v416
      %v494 = vpack.c.bf16 %v427, %v424
      %v495 = vpack.c.bf16 %v435, %v432
      %v496 = vpack.c.bf16 %v443, %v440
      %v497 = vpack.c.bf16 %v451, %v448
      %v498 = vpack.c.bf16 %v459, %v456
      %v499 = vpack.c.bf16 %v467, %v464
      %v500 = vpack.c.bf16 %v475, %v472
      %v501 = vpack.c.bf16 %v483, %v480
      %v518 = vunpack.c.l.b16 %v486
      %v519 = vunpack.c.h.b16 %v486
      %v520 = vunpack.c.l.b16 %v487
      %v521 = vunpack.c.h.b16 %v487
      %v522 = vunpack.c.l.b16 %v488
      %v523 = vunpack.c.h.b16 %v488
      %v524 = vunpack.c.l.b16 %v489
      %v525 = vunpack.c.h.b16 %v489
      %v526 = vunpack.c.l.b16 %v490
      %v527 = vunpack.c.h.b16 %v490
      %v528 = vunpack.c.l.b16 %v491
      %v529 = vunpack.c.h.b16 %v491
      %v530 = vunpack.c.l.b16 %v492
      %v531 = vunpack.c.h.b16 %v492
      %v532 = vunpack.c.l.b16 %v493
      %v533 = vunpack.c.h.b16 %v493
      %v534 = vunpack.c.l.b16 %v494
      %v535 = vunpack.c.h.b16 %v494
      %v536 = vunpack.c.l.b16 %v495
      %v537 = vunpack.c.h.b16 %v495
      %v538 = vunpack.c.l.b16 %v496
      %v539 = vunpack.c.h.b16 %v496
      %v540 = vunpack.c.l.b16 %v497
      %v541 = vunpack.c.h.b16 %v497
      %v542 = vunpack.c.l.b16 %v498
      %v543 = vunpack.c.h.b16 %v498
      %v544 = vunpack.c.l.b16 %v499
      %v545 = vunpack.c.h.b16 %v499
      %v546 = vunpack.c.l.b16 %v500
      %v547 = vunpack.c.h.b16 %v500
      %v548 = vunpack.c.l.b16 %v501
      %v549 = vunpack.c.h.b16 %v501
      %v550 = vpack.c.b16 %v518, %v518
      %v551 = vpack.c.b16 %v519, %v519
      %v552 = vpack.c.b16 %v520, %v520
      %v553 = vpack.c.b16 %v521, %v521
      %v554 = vpack.c.b16 %v522, %v522
      %v555 = vpack.c.b16 %v523, %v523
      %v556 = vpack.c.b16 %v524, %v524
      %v557 = vpack.c.b16 %v525, %v525
      %v558 = vpack.c.b16 %v526, %v526
      %v559 = vpack.c.b16 %v527, %v527
      %v560 = vpack.c.b16 %v528, %v528
      %v561 = vpack.c.b16 %v529, %v529
      %v562 = vpack.c.b16 %v530, %v530
      %v563 = vpack.c.b16 %v531, %v531
      %v564 = vpack.c.b16 %v532, %v532
      %v565 = vpack.c.b16 %v533, %v533
      %v566 = vpack.c.b16 %v534, %v534
      %v567 = vpack.c.b16 %v535, %v535
      %v568 = vpack.c.b16 %v536, %v536
      %v569 = vpack.c.b16 %v537, %v537
      %v570 = vpack.c.b16 %v538, %v538
      %v571 = vpack.c.b16 %v539, %v539
      %v572 = vpack.c.b16 %v540, %v540
      %v573 = vpack.c.b16 %v541, %v541
      %v574 = vpack.c.b16 %v542, %v542
      %v575 = vpack.c.b16 %v543, %v543
      %v576 = vpack.c.b16 %v544, %v544
      %v577 = vpack.c.b16 %v545, %v545
      %v578 = vpack.c.b16 %v546, %v546
      %v579 = vpack.c.b16 %v547, %v547
      %v580 = vpack.c.b16 %v548, %v548
      %v581 = vpack.c.b16 %v549, %v549
      %614 = vst [vmem:[%s145] sm:$0xf] %v550
      %615 = vst [vmem:[%s145 + $0x4] sm:$0xf] %v551
      %616 = vst [vmem:[%s145 + $0x8] sm:$0xf] %v552
      %617 = vst [vmem:[%s145 + $0xc] sm:$0xf] %v553
      %618 = vst [vmem:[%s145 + $0x10] sm:$0xf] %v554
      %619 = vst [vmem:[%s145 + $0x14] sm:$0xf] %v555
      %620 = vst [vmem:[%s145 + $0x18] sm:$0xf] %v556
      %621 = vst [vmem:[%s145 + $0x1c] sm:$0xf] %v557
      %622 = vst [vmem:[%s145 + $0x20] sm:$0xf] %v558
      %623 = vst [vmem:[%s145 + $0x24] sm:$0xf] %v559
      %624 = vst [vmem:[%s145 + $0x28] sm:$0xf] %v560
      %625 = vst [vmem:[%s145 + $0x2c] sm:$0xf] %v561
      %626 = vst [vmem:[%s145 + $0x30] sm:$0xf] %v562
      %627 = vst [vmem:[%s145 + $0x34] sm:$0xf] %v563
      %628 = vst [vmem:[%s145 + $0x38] sm:$0xf] %v564
      %629 = vst [vmem:[%s145 + $0x3c] sm:$0xf] %v565
      %630 = vst [vmem:[%s145 + $0x40] sm:$0xf] %v566
      %631 = vst [vmem:[%s145 + $0x44] sm:$0xf] %v567
      %632 = vst [vmem:[%s145 + $0x48] sm:$0xf] %v568
      %633 = vst [vmem:[%s145 + $0x4c] sm:$0xf] %v569
      %634 = vst [vmem:[%s145 + $0x50] sm:$0xf] %v570
      %635 = vst [vmem:[%s145 + $0x54] sm:$0xf] %v571
      %636 = vst [vmem:[%s145 + $0x58] sm:$0xf] %v572
      %637 = vst [vmem:[%s145 + $0x5c] sm:$0xf] %v573
      %638 = vst [vmem:[%s145 + $0x60] sm:$0xf] %v574
      %639 = vst [vmem:[%s145 + $0x64] sm:$0xf] %v575
      %640 = vst [vmem:[%s145 + $0x68] sm:$0xf] %v576
      %641 = vst [vmem:[%s145 + $0x6c] sm:$0xf] %v577
      %642 = vst [vmem:[%s145 + $0x70] sm:$0xf] %v578
      %643 = vst [vmem:[%s145 + $0x74] sm:$0xf] %v579
      %644 = vst [vmem:[%s145 + $0x78] sm:$0xf] %v580
      %645 = vst [vmem:[%s145 + $0x7c] sm:$0xf] %v581
      %s646 = smul.u32 32, %s13
      %p647 = scmp.lt.s32.totalorder %s646, 63
      %s648 = scalar_select %p647, %s646, 63
      %s649 = smul.addr %s648, 4
      %s650 = scalar_lea.vmem %s2, %s649
      // Predicated region
      $region29: #{_lambda_.2} parent=27 // pred_check
        %p651 = pneg %p78
      $region30: #{_lambda_.2} parent=27 // pred_check_branch
        %653 = sbr.rel (%p651) target = $region32
      $region31: #{_lambda_.2} parent=27 // pred_region
        %s654 = smul.u32 32, %s13
      $region32: #{_lambda_.2} parent=27 // pred_fallthru
        _
    $region28: #{_lambda_.2} parent=5 // pred_fallthru
      _
    %p655 = scmp.le.s32.totalorder 2, %s8
    // Predicated region
    $region33: #{_lambda_.2} parent=5 // pred_check
      %p656 = pneg %p655
    $region34: #{_lambda_.2} parent=5 // pred_check_branch
      %658 = sbr.rel (%p656) target = $region36
    $region35: #{_lambda_.2} parent=5 // pred_region
      %s659 = ssub.s32 %s8, 2
      // Predicated region
      $region37: #{_lambda_.2} parent=35 // pred_check
        %p660 = pneg %p84
      $region38: #{_lambda_.2} parent=35 // pred_check_branch
        %662 = sbr.rel (%p660) target = $region40
      $region39: #{_lambda_.2} parent=35 // pred_region
        %s663 = smul.u32 32, %s14
        %p664 = scmp.lt.s32.totalorder %s663, 63
        %s665 = scalar_select %p664, %s663, 63
        %s666 = smul.addr %s665, 4
        %s667 = scalar_lea.vmem %s2, %s666
      $region40: #{_lambda_.2} parent=35 // pred_fallthru
        _
    $region36: #{_lambda_.2} parent=5 // pred_fallthru
      _
  $region6: #{_lambda_.2} parent=0 // loop_footer
    %s12 = sadd.s32 1, %s8
  $region7: #{_lambda_.2} parent=0 // loop_footer_branch
    %7 = sbr.rel target = $region3
  $region8: #{_lambda_.2} parent=0 // loop_exit
    _

// kernel: _lambda_.3
$region0: #{_lambda_.3}
  #allocation0 [shape = 'u32[]', space=smem, size = 0x4, offset = 0x4, fixed_abs, tag = 'smem constant byte address 0x4 - core index']
  #allocation1 [shape = 'u32[144,128]{1,0:T(1,128)}', space=vmem, size = 0x12000, scoped, tag = 'internal scratch']
  %s0 = inlined_call_operand.vmem [shape: bf16[256,32], index: 0, kind: input, shape index: {}]
  %s1 = inlined_call_operand.vmem [shape: bf16[32,128], index: 1, kind: input, shape index: {}]
  %s2 = inlined_call_operand.vmem [shape: f32[256,128], index: 2, kind: output, shape index: {}]
  %s3 = sld [smem:[#allocation0]]
  $region41: #{_lambda_.3} parent=0
    _
  %s5 = ssub.s32 1, %s3
  %s6 = scalar_select 0, %s5, %s3
  loop: start=0, step=1, limit=4
  $region2: #{_lambda_.3} parent=0 // loop_pre_header
    _
  $region3: #{_lambda_.3} parent=0 // loop_header
    %s8 = sphi 0, %s12
    %p9 = scmp.ge.s32.totalorder %s8, 4
    %s18 = sphi 0, %s20
    %s21 = sphi 0, %s18
    %s22 = sphi 0, %s21
    %s38 = sphi 0, %s22
    %s42 = sphi 0, %s42
    %s44 = sphi 0, %s42
    %s45 = sphi 0, %s44
    %s59 = sphi 0, %s45
    %s65 = sphi 0, %s67
    %s68 = sphi 0, %s65
    %s69 = sphi 0, %s68
    %s85 = sphi 0, %s69
  $region4: #{_lambda_.3} parent=0 // loop_header_branch
    %11 = sbr.rel (%p9) target = $region8
  $region5: #{_lambda_.3} parent=0 // loop_body
    %s13 = ssub.s32 %s8, 1
    %s14 = ssub.s32 %s8, 2
    %s15 = sadd.s32 %s8, 1
    %s16 = ssub.s32 %s8, %s15
    %p17 = scmp.eq.s32.totalorder %s16, 0
    %s19 = sadd.s32 %s18, 1
    %s20 = scalar_select %p17, %s18, %s19
    %p23 = pneg %p17
    %p24 = scmp.eq.s32.totalorder %s8, 1
    %p25 = por %p23, %p24
    %p26 = scmp.ne.s32.totalorder %s18, %s21
    %p27 = scmp.eq.s32.totalorder %s8, 0
    %p28 = por %p26, %p27
    %p29 = scmp.ne.s32.totalorder %s18, %s21
    %p30 = scmp.eq.s32.totalorder %s13, 1
    %p31 = por %p29, %p30
    %p32 = scmp.ne.s32.totalorder %s21, %s22
    %p33 = scmp.eq.s32.totalorder %s13, 0
    %p34 = por %p32, %p33
    %p35 = scmp.ne.s32.totalorder %s21, %s22
    %p36 = scmp.eq.s32.totalorder %s14, 1
    %p37 = por %p35, %p36
    %p39 = scmp.ne.s32.totalorder %s22, %s38
    %p40 = scmp.eq.s32.totalorder %s14, 0
    %p41 = por %p39, %p40
    %s43 = sadd.s32 %s42, 1
    %p46 = scmp.eq.s32.totalorder %s8, 1
    %p47 = scmp.ne.s32.totalorder %s42, %s44
    %p48 = scmp.eq.s32.totalorder %s8, 0
    %p49 = por %p47, %p48
    %p50 = scmp.ne.s32.totalorder %s42, %s44
    %p51 = scmp.eq.s32.totalorder %s13, 1
    %p52 = por %p50, %p51
    %p53 = scmp.ne.s32.totalorder %s44, %s45
    %p54 = scmp.eq.s32.totalorder %s13, 0
    %p55 = por %p53, %p54
    %p56 = scmp.ne.s32.totalorder %s44, %s45
    %p57 = scmp.eq.s32.totalorder %s14, 1
    %p58 = por %p56, %p57
    %p60 = scmp.ne.s32.totalorder %s45, %s59
    %p61 = scmp.eq.s32.totalorder %s14, 0
    %p62 = por %p60, %p61
    %s63 = ssub.s32 %s8, %s15
    %p64 = scmp.eq.s32.totalorder %s63, 0
    %s66 = sadd.s32 %s65, 1
    %s67 = scalar_select %p64, %s65, %s66
    %p70 = pneg %p64
    %p71 = scmp.eq.s32.totalorder %s8, 1
    %p72 = por %p70, %p71
    %p73 = scmp.ne.s32.totalorder %s65, %s68
    %p74 = scmp.eq.s32.totalorder %s8, 0
    %p75 = por %p73, %p74
    %p76 = scmp.ne.s32.totalorder %s65, %s68
    %p77 = scmp.eq.s32.totalorder %s13, 1
    %p78 = por %p76, %p77
    %p79 = scmp.ne.s32.totalorder %s68, %s69
    %p80 = scmp.eq.s32.totalorder %s13, 0
    %p81 = por %p79, %p80
    %p82 = scmp.ne.s32.totalorder %s68, %s69
    %p83 = scmp.eq.s32.totalorder %s14, 1
    %p84 = por %p82, %p83
    %p86 = scmp.ne.s32.totalorder %s69, %s85
    %p87 = scmp.eq.s32.totalorder %s14, 0
    %p88 = por %p86, %p87
    %p89 = scmp.le.s32.totalorder 1, %s8
    %p90 = scmp.lt.s32.totalorder %s8, 3
    %p91 = pnand %p89, %p90
    %p92 = pneg %p91
    // Predicated region
    $region9: #{_lambda_.3} parent=5 // pred_check
      _
    $region10: #{_lambda_.3} parent=5 // pred_check_branch
      %94 = sbr.rel (%p91) target = $region12
    $region11: #{_lambda_.3} parent=5 // pred_region
      %s95 = ssub.s32 %s8, 1
      // Predicated region
      $region13: #{_lambda_.3} parent=11 // pred_check
        %p96 = pneg %p55
      $region14: #{_lambda_.3} parent=11 // pred_check_branch
        %98 = sbr.rel (%p96) target = $region16
      $region15: #{_lambda_.3} parent=11 // pred_region
        _
      $region16: #{_lambda_.3} parent=11 // pred_fallthru
        _
    $region12: #{_lambda_.3} parent=5 // pred_fallthru
      _
    %p99 = scmp.lt.s32.totalorder %s8, 2
    // Predicated region
    $region17: #{_lambda_.3} parent=5 // pred_check
      %p100 = pneg %p99
    $region18: #{_lambda_.3} parent=5 // pred_check_branch
      %102 = sbr.rel (%p100) target = $region20
    $region19: #{_lambda_.3} parent=5 // pred_region
      // Predicated region
      $region21: #{_lambda_.3} parent=19 // pred_check
        %p103 = pneg %p28
      $region22: #{_lambda_.3} parent=19 // pred_check_branch
        %105 = sbr.rel (%p103) target = $region24
      $region23: #{_lambda_.3} parent=19 // pred_region
        %s106 = smul.u32 16, %s8
        %p107 = scmp.lt.s32.totalorder %s106, 31
        %s108 = scalar_select %p107, %s106, 31
        %s109 = smul.addr %s108, 4
        %s110 = scalar_lea.vmem %s0, %s109
        %s111 = smul.u32 16, %s8
      $region24: #{_lambda_.3} parent=19 // pred_fallthru
        _
    $region20: #{_lambda_.3} parent=5 // pred_fallthru
      _
    %p112 = scmp.le.s32.totalorder 1, %s8
    %p113 = scmp.lt.s32.totalorder %s8, 3
    %p114 = pnand %p112, %p113
    %p115 = pneg %p114
    // Predicated region
    $region25: #{_lambda_.3} parent=5 // pred_check
      _
    $region26: #{_lambda_.3} parent=5 // pred_check_branch
      %117 = sbr.rel (%p114) target = $region28
    $region27: #{_lambda_.3} parent=5 // pred_region
      %s118 = ssub.s32 %s8, 1
      %s119 = smul.u32 16, %s13
      %p120 = scmp.lt.s32.totalorder %s119, 31
      %s121 = scalar_select %p120, %s119, 31
      %s122 = smul.addr %s121, 4
      %s123 = scalar_lea.vmem %s0, %s122
      %p124 = pneg %p34
      %p125 = pneg %p31
      %p126 = pneg %p55
      %p127 = pneg %p52
      %p128 = pneg %p81
      %p129 = pneg %p78
      %s130 = smul.u32 16, %s13
      %p131 = scmp.lt.s32.totalorder %s130, 31
      %s132 = scalar_select %p131, %s130, 31
      %s133 = smul.addr %s132, 8
      %s134 = scalar_lea.vmem %s2, %s133
      %s135 = smul.u32 16, %s13
      %p136 = scmp.lt.s32.totalorder %s135, 31
      %s137 = scalar_select %p136, %s135, 31
      %s138 = smul.addr %s137, 4
      %s139 = scalar_lea.vmem %s0, %s138
      %s140 = smul.u32 16, %s13
      %s141 = smul.u32 16, %s13
      %p142 = scmp.lt.s32.totalorder %s141, 31
      %s143 = scalar_select %p142, %s141, 31
      %s144 = smul.addr %s143, 8
      %s145 = scalar_lea.vmem %s2, %s144
      %s146 = smul.u32 16, %s13
      %v148 = vld [vmem:[%s139] sm:$0xf]
      %v149 = vld [vmem:[%s139 + $0x4] sm:$0xf]
      %v150 = vld [vmem:[%s139 + $0x8] sm:$0xf]
      %v151 = vld [vmem:[%s139 + $0xc] sm:$0xf]
      %v152 = vld [vmem:[%s139 + $0x10] sm:$0xf]
      %v153 = vld [vmem:[%s139 + $0x14] sm:$0xf]
      %v154 = vld [vmem:[%s139 + $0x18] sm:$0xf]
      %v155 = vld [vmem:[%s139 + $0x1c] sm:$0xf]
      %v156 = vld [vmem:[%s139 + $0x20] sm:$0xf]
      %v157 = vld [vmem:[%s139 + $0x24] sm:$0xf]
      %v158 = vld [vmem:[%s139 + $0x28] sm:$0xf]
      %v159 = vld [vmem:[%s139 + $0x2c] sm:$0xf]
      %v160 = vld [vmem:[%s139 + $0x30] sm:$0xf]
      %v161 = vld [vmem:[%s139 + $0x34] sm:$0xf]
      %v162 = vld [vmem:[%s139 + $0x38] sm:$0xf]
      %v163 = vld [vmem:[%s139 + $0x3c] sm:$0xf]
      %v164 = vld [vmem:[%s1] sm:$0xf]
      %v165 = vld [vmem:[%s1 + $0x4] sm:$0xf]
      %v166 = vld [vmem:[%s1 + $0x8] sm:$0xf]
      %v167 = vld [vmem:[%s1 + $0xc] sm:$0xf]
      %v184 = vunpack.c.l.b16 %v148
      %v185 = vunpack.c.l.b16 %v149
      %v186 = vunpack.c.l.b16 %v150
      %v187 = vunpack.c.l.b16 %v151
      %v188 = vunpack.c.l.b16 %v152
      %v189 = vunpack.c.l.b16 %v153
      %v190 = vunpack.c.l.b16 %v154
      %v191 = vunpack.c.l.b16 %v155
      %v192 = vunpack.c.l.b16 %v156
      %v193 = vunpack.c.l.b16 %v157
      %v194 = vunpack.c.l.b16 %v158
      %v195 = vunpack.c.l.b16 %v159
      %v196 = vunpack.c.l.b16 %v160
      %v197 = vunpack.c.l.b16 %v161
      %v198 = vunpack.c.l.b16 %v162
      %v199 = vunpack.c.l.b16 %v163
      %v200 = vpack.c.b16 %v185, %v184
      %v201 = vpack.c.b16 %v187, %v186
      %v202 = vpack.c.b16 %v189, %v188
      %v203 = vpack.c.b16 %v191, %v190
      %v204 = vpack.c.b16 %v193, %v192
      %v205 = vpack.c.b16 %v195, %v194
      %v206 = vpack.c.b16 %v197, %v196
      %v207 = vpack.c.b16 %v199, %v198
      %v212 = vunpack.c.l.b16 %v164
      %v213 = vunpack.c.l.b16 %v165
      %v214 = vunpack.c.l.b16 %v166
      %v215 = vunpack.c.l.b16 %v167
      %v216 = vpack.c.b16 %v213, %v212
      %v217 = vpack.c.b16 %v215, %v214
      %vm220 = vcmask 261120
      %v222 = vsel %vm220, %v200, 0
      %v225 = vsel %vm220, %v201, 0
      %v228 = vsel %vm220, %v202, 0
      %v231 = vsel %vm220, %v203, 0
      %v234 = vsel %vm220, %v204, 0
      %v237 = vsel %vm220, %v205, 0
      %v240 = vsel %vm220, %v206, 0
      %v243 = vsel %vm220, %v207, 0
      %245 = vmatprep.subr.bf16.mxu0 0
      %246 = vmatpush1.bf16.msra.mxu0 %v216
      %247 = vmatprep.subr.bf16.mxu0 0
      %248 = vmatpush1.bf16.msra.mxu0 %v217
      %249 = vmatprep.subr.bf16.mxu0 0
      %250 = vmatpush1.bf16.msra.mxu0 0
      %251 = vmatprep.subr.bf16.mxu0 0
      %252 = vmatpush1.bf16.msra.mxu0 0
      %253 = vmatprep.subr.bf16.mxu0 0
      %254 = vmatpush1.bf16.msra.mxu0 0
      %255 = vmatprep.subr.bf16.mxu0 0
      %256 = vmatpush1.bf16.msra.mxu0 0
      %257 = vmatprep.subr.bf16.mxu0 0
      %258 = vmatpush1.bf16.msra.mxu0 0
      %259 = vmatprep.subr.bf16.mxu0 0
      %260 = vmatpush1.bf16.msra.mxu0 0
      %261 = vmatprep.subr.bf16.mxu0 0
      %262 = vmatpush1.bf16.msra.mxu0 0
      %263 = vmatprep.subr.bf16.mxu0 0
      %264 = vmatpush1.bf16.msra.mxu0 0
      %265 = vmatprep.subr.bf16.mxu0 0
      %266 = vmatpush1.bf16.msra.mxu0 0
      %267 = vmatprep.subr.bf16.mxu0 0
      %268 = vmatpush1.bf16.msra.mxu0 0
      %269 = vmatprep.subr.bf16.mxu0 0
      %270 = vmatpush1.bf16.msra.mxu0 0
      %271 = vmatprep.subr.bf16.mxu0 0
      %272 = vmatpush1.bf16.msra.mxu0 0
      %273 = vmatprep.subr.bf16.mxu0 0
      %274 = vmatpush1.bf16.msra.mxu0 0
      %275 = vmatprep.subr.bf16.mxu0 0
      %276 = vmatpush1.bf16.msra.mxu0 0
      %277 = vmatprep.mubr.bf16.mxu0 0
      %278 = vmatmul.mubr.bf16.gmra.mrb[0].mxu0 %v222
      %v279 = vpop.f32.mrb[0].mxu0
      %v280 = vadd.f32 0.0, %v279
      %v281 = vpop.f32.mrb[0].mxu0
      %v282 = vpop.f32.mrb[0].mxu0
      %v283 = vadd.f32 0.0, %v282
      %v284 = vpop.f32.mrb[0].mxu0
      %285 = vmatprep.mubr.bf16.mxu0 0
      %286 = vmatmul.mubr.bf16.gmra.mrb[0].mxu0 %v225
      %v287 = vpop.f32.mrb[0].mxu0
      %v288 = vadd.f32 0.0, %v287
      %v289 = vpop.f32.mrb[0].mxu0
      %v290 = vpop.f32.mrb[0].mxu0
      %v291 = vadd.f32 0.0, %v290
      %v292 = vpop.f32.mrb[0].mxu0
      %293 = vmatprep.mubr.bf16.mxu0 0
      %294 = vmatmul.mubr.bf16.gmra.mrb[0].mxu0 %v228
      %v295 = vpop.f32.mrb[0].mxu0
      %v296 = vadd.f32 0.0, %v295
      %v297 = vpop.f32.mrb[0].mxu0
      %v298 = vpop.f32.mrb[0].mxu0
      %v299 = vadd.f32 0.0, %v298
      %v300 = vpop.f32.mrb[0].mxu0
      %301 = vmatprep.mubr.bf16.mxu0 0
      %302 = vmatmul.mubr.bf16.gmra.mrb[0].mxu0 %v231
      %v303 = vpop.f32.mrb[0].mxu0
      %v304 = vadd.f32 0.0, %v303
      %v305 = vpop.f32.mrb[0].mxu0
      %v306 = vpop.f32.mrb[0].mxu0
      %v307 = vadd.f32 0.0, %v306
      %v308 = vpop.f32.mrb[0].mxu0
      %309 = vmatprep.mubr.bf16.mxu0 0
      %310 = vmatmul.mubr.bf16.gmra.mrb[0].mxu0 %v234
      %v311 = vpop.f32.mrb[0].mxu0
      %v312 = vadd.f32 0.0, %v311
      %v313 = vpop.f32.mrb[0].mxu0
      %v314 = vpop.f32.mrb[0].mxu0
      %v315 = vadd.f32 0.0, %v314
      %v316 = vpop.f32.mrb[0].mxu0
      %317 = vmatprep.mubr.bf16.mxu0 0
      %318 = vmatmul.mubr.bf16.gmra.mrb[0].mxu0 %v237
      %v319 = vpop.f32.mrb[0].mxu0
      %v320 = vadd.f32 0.0, %v319
      %v321 = vpop.f32.mrb[0].mxu0
      %v322 = vpop.f32.mrb[0].mxu0
      %v323 = vadd.f32 0.0, %v322
      %v324 = vpop.f32.mrb[0].mxu0
      %325 = vmatprep.mubr.bf16.mxu0 0
      %326 = vmatmul.mubr.bf16.gmra.mrb[0].mxu0 %v240
      %v327 = vpop.f32.mrb[0].mxu0
      %v328 = vadd.f32 0.0, %v327
      %v329 = vpop.f32.mrb[0].mxu0
      %v330 = vpop.f32.mrb[0].mxu0
      %v331 = vadd.f32 0.0, %v330
      %v332 = vpop.f32.mrb[0].mxu0
      %333 = vmatprep.mubr.bf16.mxu0 0
      %334 = vmatmul.mubr.bf16.gmra.mrb[0].mxu0 %v243
      %v335 = vpop.f32.mrb[0].mxu0
      %v336 = vadd.f32 0.0, %v335
      %v337 = vpop.f32.mrb[0].mxu0
      %v338 = vpop.f32.mrb[0].mxu0
      %v339 = vadd.f32 0.0, %v338
      %v340 = vpop.f32.mrb[0].mxu0
      %341 = vdwg.mxu0
      %342 = vst [vmem:[%s145] sm:$0xff] %v280
      %343 = vst [vmem:[%s145 + $0x8] sm:$0xff] %v283
      %344 = vst [vmem:[%s145 + $0x10] sm:$0xff] %v288
      %345 = vst [vmem:[%s145 + $0x18] sm:$0xff] %v291
      %346 = vst [vmem:[%s145 + $0x20] sm:$0xff] %v296
      %347 = vst [vmem:[%s145 + $0x28] sm:$0xff] %v299
      %348 = vst [vmem:[%s145 + $0x30] sm:$0xff] %v304
      %349 = vst [vmem:[%s145 + $0x38] sm:$0xff] %v307
      %350 = vst [vmem:[%s145 + $0x40] sm:$0xff] %v312
      %351 = vst [vmem:[%s145 + $0x48] sm:$0xff] %v315
      %352 = vst [vmem:[%s145 + $0x50] sm:$0xff] %v320
      %353 = vst [vmem:[%s145 + $0x58] sm:$0xff] %v323
      %354 = vst [vmem:[%s145 + $0x60] sm:$0xff] %v328
      %355 = vst [vmem:[%s145 + $0x68] sm:$0xff] %v331
      %356 = vst [vmem:[%s145 + $0x70] sm:$0xff] %v336
      %357 = vst [vmem:[%s145 + $0x78] sm:$0xff] %v339
      %s358 = smul.u32 16, %s13
      %p359 = scmp.lt.s32.totalorder %s358, 31
      %s360 = scalar_select %p359, %s358, 31
      %s361 = smul.addr %s360, 8
      %s362 = scalar_lea.vmem %s2, %s361
      // Predicated region
      $region29: #{_lambda_.3} parent=27 // pred_check
        %p363 = pneg %p78
      $region30: #{_lambda_.3} parent=27 // pred_check_branch
        %365 = sbr.rel (%p363) target = $region32
      $region31: #{_lambda_.3} parent=27 // pred_region
        %s366 = smul.u32 16, %s13
      $region32: #{_lambda_.3} parent=27 // pred_fallthru
        _
    $region28: #{_lambda_.3} parent=5 // pred_fallthru
      _
    %p367 = scmp.le.s32.totalorder 2, %s8
    // Predicated region
    $region33: #{_lambda_.3} parent=5 // pred_check
      %p368 = pneg %p367
    $region34: #{_lambda_.3} parent=5 // pred_check_branch
      %370 = sbr.rel (%p368) target = $region36
    $region35: #{_lambda_.3} parent=5 // pred_region
      %s371 = ssub.s32 %s8, 2
      // Predicated region
      $region37: #{_lambda_.3} parent=35 // pred_check
        %p372 = pneg %p84
      $region38: #{_lambda_.3} parent=35 // pred_check_branch
        %374 = sbr.rel (%p372) target = $region40
      $region39: #{_lambda_.3} parent=35 // pred_region
        %s375 = smul.u32 16, %s14
        %p376 = scmp.lt.s32.totalorder %s375, 31
        %s377 = scalar_select %p376, %s375, 31
        %s378 = smul.addr %s377, 8
        %s379 = scalar_lea.vmem %s2, %s378
      $region40: #{_lambda_.3} parent=35 // pred_fallthru
        _
    $region36: #{_lambda_.3} parent=5 // pred_fallthru
      _
  $region6: #{_lambda_.3} parent=0 // loop_footer
    %s12 = sadd.s32 1, %s8
  $region7: #{_lambda_.3} parent=0 // loop_footer_branch
    %7 = sbr.rel target = $region3
  $region8: #{_lambda_.3} parent=0 // loop_exit
    _

</llo_original>
